<compile_context>
chip_gen: v7x
topology: tpu7x:2x2x1
jax: 0.10.0
libtpu: 0.0.40
codegen_flags: <defaults>
</compile_context>

<pallas_src>
import jax
import jax.numpy as jnp
import numpy as np
from jax import lax
from jax.experimental import pallas as pl
from jax.experimental.pallas import tpu as pltpu


def _round_up(x: int, m: int) -> int:
    return ((x + m - 1) // m) * m


def _cdiv(a: int, b: int) -> int:
    return -(-a // b)


def _vmem_limits():
    """Returns (explicit scoped-VMEM limit, data budget for double-buffered tiles)."""
    try:
        phys = int(pltpu.get_tpu_info().vmem_capacity_bytes)
    except Exception:
        phys = 0
    if phys <= 0:
        phys = 64 << 20                       # assume strictest current gen (v7x)
    limit = min(3 * phys // 4, 96 << 20)      # v7x -> ~48 MiB, v5e/v6e -> up to 96 MiB
    return limit, limit // 2


def _make_kernel(*, C_in, C_out, K, padding, L, TL, n_t, has_halo, use_mxu,
                 compute_dtype):
    op_dtype = compute_dtype if use_mxu else jnp.float32

    def kernel(*refs):
        if has_halo:
            x_ref, xp_ref, xn_ref, w_ref, b_ref, o_ref = refs
        else:
            x_ref, w_ref, b_ref, o_ref = refs
            xp_ref = xn_ref = None

        t = pl.program_id(1)
        lane = lax.broadcasted_iota(jnp.int32, (C_in, TL), 1)

        # One hoisted cast of the tile; lanes past the real length act as the
        # conv's zero pad (and sanitize garbage in a partial boundary block).
        xm = x_ref[0].astype(op_dtype)
        if n_t * TL > L:                      # static: only when a tile overhangs
            xm = jnp.where(t * TL + lane < L, xm, 0.0)

        def shifted(d):
            """xs[:, j] = x[:, t*TL + j + d], zero outside [0, L)."""
            if d == 0:
                return xm
            xs = pltpu.roll(xm, (-d) % TL, axis=1)       # XLU lane rotation
            boundary = range(0, -d) if d < 0 else range(TL - d, TL)
            for j in boundary:                # <= max(padding, K-1-padding) columns
                if has_halo:
                    g = t * TL + j + d        # global x index this lane needs
                    gv = jnp.zeros((C_in, 1), jnp.int32) + g
                    if d < 0:
                        src = xp_ref[0, :, 128 + j + d:129 + j + d]    # (C_in, 1)
                    else:
                        src = xn_ref[0, :, j + d - TL:j + d - TL + 1]  # (C_in, 1)
                    col = jnp.where((gv >= 0) & (gv < L), src.astype(op_dtype), 0.0)
                    xs = jnp.where(lane == j, col, xs)
                else:
                    # single tile covers all of x: halo columns are always pad
                    xs = jnp.where(lane == j, 0.0, xs)
            return xs

        if use_mxu:
            # Stacked-tap single MXU matmul: (C_out, K*C_in) @ (K*C_in, TL).
            xs_stack = jnp.concatenate([shifted(k - padding) for k in range(K)],
                                       axis=0)
            acc = jnp.dot(w_ref[...], xs_stack, preferred_element_type=jnp.float32)
            acc = acc + b_ref[...]
        else:
            # VPU broadcast-FMA path: C_in*K (C_out,1)x(1,TL) outer-product FMAs.
            acc = jnp.broadcast_to(b_ref[...], (C_out, TL)).astype(jnp.float32)
            for k in range(K):
                xs = shifted(k - padding)
                for i in range(C_in):
                    acc = acc + w_ref[k, i] * xs[i:i + 1, :]

        o_ref[0] = jnp.maximum(acc, 0.0).astype(o_ref.dtype)

    return kernel


def conv1d_layer(x, weight, bias, *, stride: int = 1, padding: int = 1,
                 tile_l: int | None = None, compute_dtype=None,
                 use_mxu: bool | None = None):
    """Forward of Conv1DLayer (norm=False): Conv1d(stride=1, padding) + bias + ReLU.

    x: (B, C_in, L); weight: (C_out, C_in, K); bias: (C_out,).
    compute_dtype: MXU-operand dtype (accumulation is always f32). Pass
      jnp.bfloat16 on v6e/v7x for peak MXU throughput; keep the default
      (= x.dtype) on v5e. The small-channel VPU path always computes in f32.
    """
    assert stride == 1, "kernel implements the module's default stride=1 config"
    B, C_in, L = x.shape
    C_out, C_in_w, K = weight.shape
    assert C_in_w == C_in
    L_out = L + 2 * padding - K + 1
    assert 1 <= L_out <= L, "supported configs keep L_out <= L (true for k=3,p=1)"
    assert padding <= 128 and (K - 1 - padding) <= 128   # halo fits one 128-chunk

    out_dtype = x.dtype
    if compute_dtype is None:
        compute_dtype = x.dtype
    if use_mxu is None:
        # Tiny channel counts (e.g. the module default 4x8x3) are cheaper as
        # VPU broadcast-FMAs than as a <1%-occupancy MXU matmul.
        use_mxu = K * C_in * _round_up(C_out, 8) >= 2048

    vmem_limit, data_budget = _vmem_limits()

    # ---- lane-dense L tiling (multiple of 128) ----
    if tile_l is None:
        c = min(_cdiv(L_out, 128), 32)                    # cap TL at 4096 lanes
        acc_rows = _round_up(C_out, 8)
        # vreg-pressure guard: live f32 accumulator (C_out, TL) under ~128 KiB
        while c > 1 and acc_rows * c * 128 * 4 > 128 * 1024:
            c //= 2
        # VMEM budget guard: double-buffered in + out tiles under the budget
        itm_in = jnp.dtype(x.dtype).itemsize
        itm_out = jnp.dtype(out_dtype).itemsize
        while c > 1 and 2 * (C_in * itm_in + C_out * itm_out) * c * 128 > data_budget:
            c //= 2
        tile_l = c * 128
    assert tile_l % 128 == 0 and tile_l >= 128
    TL = tile_l
    n_t = _cdiv(L_out, TL)          # L-tile grid extent
    cpt = TL // 128                 # 128-lane chunks per tile
    n_chunks = _cdiv(L, 128)        # 128-lane chunks of x (halo blocking)
    # A single tile that already covers all of x needs no cross-tile halo DMAs.
    has_halo = not (n_t == 1 and TL >= L)

    # ---- reorganize parameters once (tiny) ----
    if use_mxu:
        # stacked-tap weights: w_r[o, k*C_in + i] = weight[o, i, k]
        w_r = (jnp.transpose(weight, (0, 2, 1))
               .reshape(C_out, K * C_in).astype(compute_dtype))
        w_spec = pl.BlockSpec((C_out, K * C_in), lambda b, t: (0, 0))
    else:
        # per-(tap, in-channel) broadcast columns: w_r[k, i, o, 0] = weight[o, i, k]
        w_r = (jnp.transpose(weight, (2, 1, 0))
               .reshape(K, C_in, C_out, 1).astype(jnp.float32))
        w_spec = pl.BlockSpec((K, C_in, C_out, 1), lambda b, t: (0, 0, 0, 0))
    b_r = bias.reshape(C_out, 1).astype(jnp.float32)

    in_specs = [pl.BlockSpec((1, C_in, TL), lambda b, t: (b, 0, t))]
    operands = [x]
    if has_halo:
        # 128-lane chunks just left / right of the tile (clamped block index;
        # the kernel zeroes injected columns at the true sequence boundaries).
        in_specs += [
            pl.BlockSpec((1, C_in, 128),
                         lambda b, t: (b, 0, jnp.maximum(t * cpt - 1, 0))),
            pl.BlockSpec((1, C_in, 128),
                         lambda b, t: (b, 0, jnp.minimum((t + 1) * cpt,
                                                         n_chunks - 1))),
        ]
        operands += [x, x]
    in_specs += [w_spec, pl.BlockSpec((C_out, 1), lambda b, t: (0, 0))]
    operands += [w_r, b_r]

    kernel = _make_kernel(C_in=C_in, C_out=C_out, K=K, padding=padding, L=L,
                          TL=TL, n_t=n_t, has_halo=has_halo, use_mxu=use_mxu,
                          compute_dtype=compute_dtype)

    cost = pl.CostEstimate(
        flops=2 * B * L_out * C_out * C_in * K,
        transcendentals=0,
        bytes_accessed=(x.size * jnp.dtype(x.dtype).itemsize
                        + B * C_out * L_out * jnp.dtype(out_dtype).itemsize
                        + w_r.size * jnp.dtype(w_r.dtype).itemsize
                        + b_r.size * 4))

    grid_spec = pltpu.PrefetchScalarGridSpec(
        num_scalar_prefetch=0,
        grid=(B, n_t),
        in_specs=in_specs,
        out_specs=pl.BlockSpec((1, C_out, TL), lambda b, t: (b, 0, t)),
    )

    # TODO(synk): InstanceNorm1d branch (norm=True) is not implemented; the
    # module's default config (norm=False -> conv + bias + ReLU) is covered.
    return pl.pallas_call(
        kernel,
        out_shape=jax.ShapeDtypeStruct((B, C_out, L_out), out_dtype),
        grid_spec=grid_spec,
        cost_estimate=cost,
        compiler_params=pltpu.CompilerParams(
            # both axes are independent output tiles -> megacore / v7x 2-TC split
            dimension_semantics=("parallel", "parallel"),
            vmem_limit_bytes=int(vmem_limit)),
    )(*operands)


if __name__ == "__main__":
    def reference(x, w, b, padding=1):
        y = lax.conv_general_dilated(
            x, w, window_strides=(1,), padding=((padding, padding),),
            dimension_numbers=("NCH", "OIH", "NCH"))
        return jnp.maximum(y + b[None, :, None], 0.0)

    root = jax.random.PRNGKey(0)
    k1, k2, k3, k4, k5, k6, k7, k8, k9 = jax.random.split(root, 9)

    # 1) Module-default tiny shapes: batch=2, in=4, out=8, length=16 (k=3,s=1,p=1)
    #    -> VPU broadcast-FMA path, single tile, no halo DMAs.
    B, C_in, C_out, L, K = 2, 4, 8, 16, 3
    x = jax.random.normal(k1, (B, C_in, L), jnp.float32)
    w = jax.random.normal(k2, (C_out, C_in, K), jnp.float32) * 0.1
    b = jax.random.normal(k3, (C_out,), jnp.float32) * 0.1
    y = jax.block_until_ready(conv1d_layer(x, w, b))
    np.testing.assert_allclose(np.asarray(y), np.asarray(reference(x, w, b)),
                               rtol=1e-5, atol=1e-5)

    # 2) Multi-tile length (exercises the cross-tile halo path), VPU path.
    B2, C2i, C2o, L2 = 2, 8, 16, 300
    x2 = jax.random.normal(k4, (B2, C2i, L2), jnp.float32)
    w2 = jax.random.normal(k5, (C2o, C2i, K), jnp.float32) * 0.1
    b2 = jax.random.normal(k6, (C2o,), jnp.float32) * 0.1
    y2 = jax.block_until_ready(conv1d_layer(x2, w2, b2, tile_l=128))
    np.testing.assert_allclose(np.asarray(y2), np.asarray(reference(x2, w2, b2)),
                               rtol=1e-5, atol=1e-5)

    # 3) Stacked-tap single-matmul MXU path (forced), f32 operands.
    B3, C3i, C3o, L3 = 2, 16, 32, 300
    x3 = jax.random.normal(k7, (B3, C3i, L3), jnp.float32)
    w3 = jax.random.normal(k8, (C3o, C3i, K), jnp.float32) * 0.1
    b3 = jax.random.normal(k9, (C3o,), jnp.float32) * 0.1
    y3 = jax.block_until_ready(conv1d_layer(x3, w3, b3, tile_l=128, use_mxu=True))
    np.testing.assert_allclose(np.asarray(y3), np.asarray(reference(x3, w3, b3)),
                               rtol=1e-5, atol=1e-5)

    # 4) bf16 MXU-operand path (single hoisted cast, f32 accumulation).
    y4 = jax.block_until_ready(
        conv1d_layer(x3, w3, b3, tile_l=128, use_mxu=True,
                     compute_dtype=jnp.bfloat16))
    np.testing.assert_allclose(np.asarray(y4), np.asarray(reference(x3, w3, b3)),
                               rtol=5e-2, atol=5e-2)

    print("KERNEL_OK")
</pallas_src>

<mosaic_0001>
module attributes {stable_mosaic.version = 11 : i64} {
  func.func @kernel(%arg0: i32, %arg1: i32, %arg2: memref<1x4x128xf32, #tpu.memory_space<vmem>>, %arg3: memref<3x4x8x1xf32, #tpu.memory_space<vmem>>, %arg4: memref<8x1xf32, #tpu.memory_space<vmem>>, %arg5: memref<1x8x128xf32, #tpu.memory_space<vmem>>) attributes {dimension_semantics = [#tpu.dimension_semantics<parallel>, #tpu.dimension_semantics<parallel>], iteration_bounds = array<i64: 2, 1>, scalar_prefetch = 0 : i64, scratch_operands = 0 : i64, tpu.core_type = #tpu.core_type<tc>, window_params = [{transform_indices = @transform_0, window_bounds = array<i64: 1, 4, 128>}, {pipeline_mode = #tpu.pipeline_mode<synchronous>, transform_indices = @transform_1, window_bounds = array<i64: 3, 4, 8, 1>}, {pipeline_mode = #tpu.pipeline_mode<synchronous>, transform_indices = @transform_2, window_bounds = array<i64: 8, 1>}, {transform_indices = @transform_3, window_bounds = array<i64: 1, 8, 128>}]} {
    %0 = tpu.iota {dimensions = array<i32: 1>} : vector<4x128xi32>
    %c0 = arith.constant 0 : index
    %c0_0 = arith.constant 0 : index
    %c0_1 = arith.constant 0 : index
    %1 = vector.load %arg2[%c0, %c0_0, %c0_1] : memref<1x4x128xf32, #tpu.memory_space<vmem>>, vector<1x4x128xf32>
    %2 = vector.shape_cast %1 : vector<1x4x128xf32> to vector<4x128xf32>
    %c128_i32 = arith.constant 128 : i32
    %3 = arith.muli %arg1, %c128_i32 : i32
    %4 = vector.broadcast %3 : i32 to vector<4x128xi32>
    %5 = arith.addi %4, %0 : vector<4x128xi32>
    %c16_i32 = arith.constant 16 : i32
    %6 = vector.broadcast %c16_i32 : i32 to vector<4x128xi32>
    %7 = arith.cmpi slt, %5, %6 : vector<4x128xi32>
    %cst = arith.constant 0.000000e+00 : f32
    %8 = vector.broadcast %cst : f32 to vector<4x128xf32>
    %9 = arith.select %7, %2, %8 : vector<4x128xi1>, vector<4x128xf32>
    %c0_2 = arith.constant 0 : index
    %c0_3 = arith.constant 0 : index
    %10 = vector.load %arg4[%c0_2, %c0_3] : memref<8x1xf32, #tpu.memory_space<vmem>>, vector<8x1xf32>
    %11 = vector.shape_cast %10 : vector<8x1xf32> to vector<8x1xf32>
    %12 = vector.broadcast %11 : vector<8x1xf32> to vector<8x128xf32>
    %c1_i32 = arith.constant 1 : i32
    %13 = tpu.dynamic_rotate %9 by %c1_i32 dim 1 : vector<4x128xf32>, i32 -> vector<4x128xf32>
    %c0_i32 = arith.constant 0 : i32
    %14 = vector.broadcast %c0_i32 : i32 to vector<4x128xi32>
    %15 = arith.cmpi eq, %0, %14 : vector<4x128xi32>
    %cst_4 = arith.constant 0.000000e+00 : f32
    %16 = vector.broadcast %cst_4 : f32 to vector<4x128xf32>
    %17 = arith.select %15, %16, %13 : vector<4x128xi1>, vector<4x128xf32>
    %c0_5 = arith.constant 0 : index
    %c0_6 = arith.constant 0 : index
    %c0_7 = arith.constant 0 : index
    %c0_8 = arith.constant 0 : index
    %18 = vector.load %arg3[%c0_5, %c0_6, %c0_7, %c0_8] : memref<3x4x8x1xf32, #tpu.memory_space<vmem>>, vector<1x1x8x1xf32>
    %19 = vector.shape_cast %18 : vector<1x1x8x1xf32> to vector<8x1xf32>
    %20 = vector.extract_strided_slice %17 {offsets = [0, 0], sizes = [1, 128], strides = [1, 1]} : vector<4x128xf32> to vector<1x128xf32>
    %21 = vector.broadcast %19 : vector<8x1xf32> to vector<8x128xf32>
    %22 = vector.broadcast %20 : vector<1x128xf32> to vector<8x128xf32>
    %23 = arith.mulf %21, %22 : vector<8x128xf32>
    %24 = arith.addf %12, %23 : vector<8x128xf32>
    %c0_9 = arith.constant 0 : index
    %c1 = arith.constant 1 : index
    %c0_10 = arith.constant 0 : index
    %c0_11 = arith.constant 0 : index
    %25 = vector.load %arg3[%c0_9, %c1, %c0_10, %c0_11] : memref<3x4x8x1xf32, #tpu.memory_space<vmem>>, vector<1x1x8x1xf32>
    %26 = vector.shape_cast %25 : vector<1x1x8x1xf32> to vector<8x1xf32>
    %27 = vector.extract_strided_slice %17 {offsets = [1, 0], sizes = [1, 128], strides = [1, 1]} : vector<4x128xf32> to vector<1x128xf32>
    %28 = vector.broadcast %26 : vector<8x1xf32> to vector<8x128xf32>
    %29 = vector.broadcast %27 : vector<1x128xf32> to vector<8x128xf32>
    %30 = arith.mulf %28, %29 : vector<8x128xf32>
    %31 = arith.addf %24, %30 : vector<8x128xf32>
    %c0_12 = arith.constant 0 : index
    %c2 = arith.constant 2 : index
    %c0_13 = arith.constant 0 : index
    %c0_14 = arith.constant 0 : index
    %32 = vector.load %arg3[%c0_12, %c2, %c0_13, %c0_14] : memref<3x4x8x1xf32, #tpu.memory_space<vmem>>, vector<1x1x8x1xf32>
    %33 = vector.shape_cast %32 : vector<1x1x8x1xf32> to vector<8x1xf32>
    %34 = vector.extract_strided_slice %17 {offsets = [2, 0], sizes = [1, 128], strides = [1, 1]} : vector<4x128xf32> to vector<1x128xf32>
    %35 = vector.broadcast %33 : vector<8x1xf32> to vector<8x128xf32>
    %36 = vector.broadcast %34 : vector<1x128xf32> to vector<8x128xf32>
    %37 = arith.mulf %35, %36 : vector<8x128xf32>
    %38 = arith.addf %31, %37 : vector<8x128xf32>
    %c0_15 = arith.constant 0 : index
    %c3 = arith.constant 3 : index
    %c0_16 = arith.constant 0 : index
    %c0_17 = arith.constant 0 : index
    %39 = vector.load %arg3[%c0_15, %c3, %c0_16, %c0_17] : memref<3x4x8x1xf32, #tpu.memory_space<vmem>>, vector<1x1x8x1xf32>
    %40 = vector.shape_cast %39 : vector<1x1x8x1xf32> to vector<8x1xf32>
    %41 = vector.extract_strided_slice %17 {offsets = [3, 0], sizes = [1, 128], strides = [1, 1]} : vector<4x128xf32> to vector<1x128xf32>
    %42 = vector.broadcast %40 : vector<8x1xf32> to vector<8x128xf32>
    %43 = vector.broadcast %41 : vector<1x128xf32> to vector<8x128xf32>
    %44 = arith.mulf %42, %43 : vector<8x128xf32>
    %45 = arith.addf %38, %44 : vector<8x128xf32>
    %c1_18 = arith.constant 1 : index
    %c0_19 = arith.constant 0 : index
    %c0_20 = arith.constant 0 : index
    %c0_21 = arith.constant 0 : index
    %46 = vector.load %arg3[%c1_18, %c0_19, %c0_20, %c0_21] : memref<3x4x8x1xf32, #tpu.memory_space<vmem>>, vector<1x1x8x1xf32>
    %47 = vector.shape_cast %46 : vector<1x1x8x1xf32> to vector<8x1xf32>
    %48 = vector.extract_strided_slice %9 {offsets = [0, 0], sizes = [1, 128], strides = [1, 1]} : vector<4x128xf32> to vector<1x128xf32>
    %49 = vector.broadcast %47 : vector<8x1xf32> to vector<8x128xf32>
    %50 = vector.broadcast %48 : vector<1x128xf32> to vector<8x128xf32>
    %51 = arith.mulf %49, %50 : vector<8x128xf32>
    %52 = arith.addf %45, %51 : vector<8x128xf32>
    %c1_22 = arith.constant 1 : index
    %c1_23 = arith.constant 1 : index
    %c0_24 = arith.constant 0 : index
    %c0_25 = arith.constant 0 : index
    %53 = vector.load %arg3[%c1_22, %c1_23, %c0_24, %c0_25] : memref<3x4x8x1xf32, #tpu.memory_space<vmem>>, vector<1x1x8x1xf32>
    %54 = vector.shape_cast %53 : vector<1x1x8x1xf32> to vector<8x1xf32>
    %55 = vector.extract_strided_slice %9 {offsets = [1, 0], sizes = [1, 128], strides = [1, 1]} : vector<4x128xf32> to vector<1x128xf32>
    %56 = vector.broadcast %54 : vector<8x1xf32> to vector<8x128xf32>
    %57 = vector.broadcast %55 : vector<1x128xf32> to vector<8x128xf32>
    %58 = arith.mulf %56, %57 : vector<8x128xf32>
    %59 = arith.addf %52, %58 : vector<8x128xf32>
    %c1_26 = arith.constant 1 : index
    %c2_27 = arith.constant 2 : index
    %c0_28 = arith.constant 0 : index
    %c0_29 = arith.constant 0 : index
    %60 = vector.load %arg3[%c1_26, %c2_27, %c0_28, %c0_29] : memref<3x4x8x1xf32, #tpu.memory_space<vmem>>, vector<1x1x8x1xf32>
    %61 = vector.shape_cast %60 : vector<1x1x8x1xf32> to vector<8x1xf32>
    %62 = vector.extract_strided_slice %9 {offsets = [2, 0], sizes = [1, 128], strides = [1, 1]} : vector<4x128xf32> to vector<1x128xf32>
    %63 = vector.broadcast %61 : vector<8x1xf32> to vector<8x128xf32>
    %64 = vector.broadcast %62 : vector<1x128xf32> to vector<8x128xf32>
    %65 = arith.mulf %63, %64 : vector<8x128xf32>
    %66 = arith.addf %59, %65 : vector<8x128xf32>
    %c1_30 = arith.constant 1 : index
    %c3_31 = arith.constant 3 : index
    %c0_32 = arith.constant 0 : index
    %c0_33 = arith.constant 0 : index
    %67 = vector.load %arg3[%c1_30, %c3_31, %c0_32, %c0_33] : memref<3x4x8x1xf32, #tpu.memory_space<vmem>>, vector<1x1x8x1xf32>
    %68 = vector.shape_cast %67 : vector<1x1x8x1xf32> to vector<8x1xf32>
    %69 = vector.extract_strided_slice %9 {offsets = [3, 0], sizes = [1, 128], strides = [1, 1]} : vector<4x128xf32> to vector<1x128xf32>
    %70 = vector.broadcast %68 : vector<8x1xf32> to vector<8x128xf32>
    %71 = vector.broadcast %69 : vector<1x128xf32> to vector<8x128xf32>
    %72 = arith.mulf %70, %71 : vector<8x128xf32>
    %73 = arith.addf %66, %72 : vector<8x128xf32>
    %c127_i32 = arith.constant 127 : i32
    %74 = tpu.dynamic_rotate %9 by %c127_i32 dim 1 : vector<4x128xf32>, i32 -> vector<4x128xf32>
    %c127_i32_34 = arith.constant 127 : i32
    %75 = vector.broadcast %c127_i32_34 : i32 to vector<4x128xi32>
    %76 = arith.cmpi eq, %0, %75 : vector<4x128xi32>
    %cst_35 = arith.constant 0.000000e+00 : f32
    %77 = vector.broadcast %cst_35 : f32 to vector<4x128xf32>
    %78 = arith.select %76, %77, %74 : vector<4x128xi1>, vector<4x128xf32>
    %c2_36 = arith.constant 2 : index
    %c0_37 = arith.constant 0 : index
    %c0_38 = arith.constant 0 : index
    %c0_39 = arith.constant 0 : index
    %79 = vector.load %arg3[%c2_36, %c0_37, %c0_38, %c0_39] : memref<3x4x8x1xf32, #tpu.memory_space<vmem>>, vector<1x1x8x1xf32>
    %80 = vector.shape_cast %79 : vector<1x1x8x1xf32> to vector<8x1xf32>
    %81 = vector.extract_strided_slice %78 {offsets = [0, 0], sizes = [1, 128], strides = [1, 1]} : vector<4x128xf32> to vector<1x128xf32>
    %82 = vector.broadcast %80 : vector<8x1xf32> to vector<8x128xf32>
    %83 = vector.broadcast %81 : vector<1x128xf32> to vector<8x128xf32>
    %84 = arith.mulf %82, %83 : vector<8x128xf32>
    %85 = arith.addf %73, %84 : vector<8x128xf32>
    %c2_40 = arith.constant 2 : index
    %c1_41 = arith.constant 1 : index
    %c0_42 = arith.constant 0 : index
    %c0_43 = arith.constant 0 : index
    %86 = vector.load %arg3[%c2_40, %c1_41, %c0_42, %c0_43] : memref<3x4x8x1xf32, #tpu.memory_space<vmem>>, vector<1x1x8x1xf32>
    %87 = vector.shape_cast %86 : vector<1x1x8x1xf32> to vector<8x1xf32>
    %88 = vector.extract_strided_slice %78 {offsets = [1, 0], sizes = [1, 128], strides = [1, 1]} : vector<4x128xf32> to vector<1x128xf32>
    %89 = vector.broadcast %87 : vector<8x1xf32> to vector<8x128xf32>
    %90 = vector.broadcast %88 : vector<1x128xf32> to vector<8x128xf32>
    %91 = arith.mulf %89, %90 : vector<8x128xf32>
    %92 = arith.addf %85, %91 : vector<8x128xf32>
    %c2_44 = arith.constant 2 : index
    %c2_45 = arith.constant 2 : index
    %c0_46 = arith.constant 0 : index
    %c0_47 = arith.constant 0 : index
    %93 = vector.load %arg3[%c2_44, %c2_45, %c0_46, %c0_47] : memref<3x4x8x1xf32, #tpu.memory_space<vmem>>, vector<1x1x8x1xf32>
    %94 = vector.shape_cast %93 : vector<1x1x8x1xf32> to vector<8x1xf32>
    %95 = vector.extract_strided_slice %78 {offsets = [2, 0], sizes = [1, 128], strides = [1, 1]} : vector<4x128xf32> to vector<1x128xf32>
    %96 = vector.broadcast %94 : vector<8x1xf32> to vector<8x128xf32>
    %97 = vector.broadcast %95 : vector<1x128xf32> to vector<8x128xf32>
    %98 = arith.mulf %96, %97 : vector<8x128xf32>
    %99 = arith.addf %92, %98 : vector<8x128xf32>
    %c2_48 = arith.constant 2 : index
    %c3_49 = arith.constant 3 : index
    %c0_50 = arith.constant 0 : index
    %c0_51 = arith.constant 0 : index
    %100 = vector.load %arg3[%c2_48, %c3_49, %c0_50, %c0_51] : memref<3x4x8x1xf32, #tpu.memory_space<vmem>>, vector<1x1x8x1xf32>
    %101 = vector.shape_cast %100 : vector<1x1x8x1xf32> to vector<8x1xf32>
    %102 = vector.extract_strided_slice %78 {offsets = [3, 0], sizes = [1, 128], strides = [1, 1]} : vector<4x128xf32> to vector<1x128xf32>
    %103 = vector.broadcast %101 : vector<8x1xf32> to vector<8x128xf32>
    %104 = vector.broadcast %102 : vector<1x128xf32> to vector<8x128xf32>
    %105 = arith.mulf %103, %104 : vector<8x128xf32>
    %106 = arith.addf %99, %105 : vector<8x128xf32>
    %cst_52 = arith.constant 0.000000e+00 : f32
    %107 = vector.broadcast %cst_52 : f32 to vector<8x128xf32>
    %108 = arith.maximumf %106, %107 : vector<8x128xf32>
    %c0_53 = arith.constant 0 : index
    %c0_54 = arith.constant 0 : index
    %c0_55 = arith.constant 0 : index
    %109 = vector.load %arg5[%c0_53, %c0_54, %c0_55] : memref<1x8x128xf32, #tpu.memory_space<vmem>>, vector<1x8x128xf32>
    %110 = vector.shape_cast %109 : vector<1x8x128xf32> to vector<8x128xf32>
    %111 = vector.shape_cast %108 : vector<8x128xf32> to vector<1x8x128xf32>
    tpu.vector_store %arg5[%c0_53, %c0_54, %c0_55], %111 {strides = array<i32>} : memref<1x8x128xf32, #tpu.memory_space<vmem>>, vector<1x8x128xf32>,
    return
  }
  func.func @transform_0(%arg0: i32, %arg1: i32) -> (i32, i32, i32) {
    %c0_i32 = arith.constant 0 : i32
    %c0_i32_0 = arith.constant 0 : i32
    return %arg0, %c0_i32, %arg1 : i32, i32, i32
  }
  func.func @transform_1(%arg0: i32, %arg1: i32) -> (i32, i32, i32, i32) {
    %c0_i32 = arith.constant 0 : i32
    %c0_i32_0 = arith.constant 0 : i32
    %c0_i32_1 = arith.constant 0 : i32
    %c0_i32_2 = arith.constant 0 : i32
    %c0_i32_3 = arith.constant 0 : i32
    return %c0_i32, %c0_i32_0, %c0_i32_1, %c0_i32_2 : i32, i32, i32, i32
  }
  func.func @transform_2(%arg0: i32, %arg1: i32) -> (i32, i32) {
    %c0_i32 = arith.constant 0 : i32
    %c0_i32_0 = arith.constant 0 : i32
    %c0_i32_1 = arith.constant 0 : i32
    return %c0_i32, %c0_i32_0 : i32, i32
  }
  func.func @transform_3(%arg0: i32, %arg1: i32) -> (i32, i32, i32) {
    %c0_i32 = arith.constant 0 : i32
    %c0_i32_0 = arith.constant 0 : i32
    return %arg0, %c0_i32, %arg1 : i32, i32, i32
  }
}

</mosaic_0001>

<llo_original>
// kernel: tpu_custom_call.1
$region0: #{tpu_custom_call.1}
  #allocation0 [shape = 'u32[]', space=smem, size = 0x4, offset = 0x4, fixed_abs, tag = 'smem constant byte address 0x4 - core index']
  #allocation1 [shape = 'u32[144,128]{1,0:T(1,128)}', space=vmem, size = 0x12000, scoped, tag = 'internal scratch']
  %s0 = inlined_call_operand.vmem [shape: f32[2,4,16], index: 0, kind: input, shape index: {}]
  %s1 = inlined_call_operand.vmem [shape: f32[3,4,8,1], index: 1, kind: input, shape index: {}]
  %s2 = inlined_call_operand.vmem [shape: f32[8,1], index: 2, kind: input, shape index: {}]
  %s3 = inlined_call_operand.hbm [shape: f32[2,8,16], index: 3, kind: output, shape index: {}]
  %s4 = sld [smem:[#allocation0]]
  $region45: #{tpu_custom_call.1} parent=0
    _
  %s6 = ssub.s32 1, %s4
  %s7 = scalar_select 0, %s6, %s4
  $region1: #{tpu_custom_call.1} parent=0
    #allocation2 [shape = 'u8[8192]{0}', space=vmem, size = 0x2000, scoped, tag = 'output window, operand 0']
    #allocation3 [shape = 's32[2]{0}', space=sflag, size = 0x8, scoped, tag = 'scoped memory for tpu_custom_call.1']
    %8 = vsyncpa [#allocation3], 0
    %s9 = scalar_lea.sflag [#allocation3], 1
    %10 = vsyncpa %s9, 0
    loop: start=0, step=1, limit=4
    $region2: #{tpu_custom_call.1} parent=1 // loop_pre_header
      _
    $region3: #{tpu_custom_call.1} parent=1 // loop_header
      %s12 = sphi 0, %s16
      %p13 = scmp.ge.s32.totalorder %s12, 4
      %s19 = sphi 0, %s31
      %s20 = sphi 0, %s27
      %s21 = sphi 0, %s19
      %s22 = sphi 0, %s20
      %s23 = sphi 0, %s21
      %s24 = sphi 0, %s22
      %s36 = sphi 0, %s38
      %s39 = sphi 0, %s36
      %s40 = sphi 0, %s39
      %s56 = sphi 0, %s40
      %s60 = sphi 0, %s60
      %s62 = sphi 0, %s60
      %s63 = sphi 0, %s62
      %s77 = sphi 0, %s63
      %s81 = sphi 0, %s81
      %s83 = sphi 0, %s81
      %s84 = sphi 0, %s83
      %s98 = sphi 0, %s84
      %s106 = sphi 0, %s108
      %s109 = sphi 0, %s106
      %s110 = sphi 0, %s109
      %s126 = sphi 0, %s110
    $region4: #{tpu_custom_call.1} parent=1 // loop_header_branch
      %15 = sbr.rel (%p13) target = $region8
    $region5: #{tpu_custom_call.1} parent=1 // loop_body
      %s17 = ssub.s32 %s12, 1
      %s18 = ssub.s32 %s12, 2
      %s25 = sadd.s32 1, %s20
      %p26 = scmp.ge.s32.totalorder %s25, 1
      %s27 = scalar_select %p26, 0, %s25
      %s28 = sadd.s32 1, %s19
      %s29 = scalar_select %p26, %s28, %s19
      %p30 = scmp.ge.s32.totalorder %s29, 2
      %s31 = scalar_select %p30, 0, %s29
      %s32 = ssub.s32 %s19, %s31
      %s33 = ssub.s32 %s20, %s27
      %s34 = sor.u32 %s32, %s33
      %p35 = scmp.eq.s32.totalorder %s34, 0
      %s37 = sadd.s32 %s36, 1
      %s38 = scalar_select %p35, %s36, %s37
      %p41 = pneg %p35
      %p42 = scmp.eq.s32.totalorder %s12, 1
      %p43 = por %p41, %p42
      %p44 = scmp.ne.s32.totalorder %s36, %s39
      %p45 = scmp.eq.s32.totalorder %s12, 0
      %p46 = por %p44, %p45
      %p47 = scmp.ne.s32.totalorder %s36, %s39
      %p48 = scmp.eq.s32.totalorder %s17, 1
      %p49 = por %p47, %p48
      %p50 = scmp.ne.s32.totalorder %s39, %s40
      %p51 = scmp.eq.s32.totalorder %s17, 0
      %p52 = por %p50, %p51
      %p53 = scmp.ne.s32.totalorder %s39, %s40
      %p54 = scmp.eq.s32.totalorder %s18, 1
      %p55 = por %p53, %p54
      %p57 = scmp.ne.s32.totalorder %s40, %s56
      %p58 = scmp.eq.s32.totalorder %s18, 0
      %p59 = por %p57, %p58
      %s61 = sadd.s32 %s60, 1
      %p64 = scmp.eq.s32.totalorder %s12, 1
      %p65 = scmp.ne.s32.totalorder %s60, %s62
      %p66 = scmp.eq.s32.totalorder %s12, 0
      %p67 = por %p65, %p66
      %p68 = scmp.ne.s32.totalorder %s60, %s62
      %p69 = scmp.eq.s32.totalorder %s17, 1
      %p70 = por %p68, %p69
      %p71 = scmp.ne.s32.totalorder %s62, %s63
      %p72 = scmp.eq.s32.totalorder %s17, 0
      %p73 = por %p71, %p72
      %p74 = scmp.ne.s32.totalorder %s62, %s63
      %p75 = scmp.eq.s32.totalorder %s18, 1
      %p76 = por %p74, %p75
      %p78 = scmp.ne.s32.totalorder %s63, %s77
      %p79 = scmp.eq.s32.totalorder %s18, 0
      %p80 = por %p78, %p79
      %s82 = sadd.s32 %s81, 1
      %p85 = scmp.eq.s32.totalorder %s12, 1
      %p86 = scmp.ne.s32.totalorder %s81, %s83
      %p87 = scmp.eq.s32.totalorder %s12, 0
      %p88 = por %p86, %p87
      %p89 = scmp.ne.s32.totalorder %s81, %s83
      %p90 = scmp.eq.s32.totalorder %s17, 1
      %p91 = por %p89, %p90
      %p92 = scmp.ne.s32.totalorder %s83, %s84
      %p93 = scmp.eq.s32.totalorder %s17, 0
      %p94 = por %p92, %p93
      %p95 = scmp.ne.s32.totalorder %s83, %s84
      %p96 = scmp.eq.s32.totalorder %s18, 1
      %p97 = por %p95, %p96
      %p99 = scmp.ne.s32.totalorder %s84, %s98
      %p100 = scmp.eq.s32.totalorder %s18, 0
      %p101 = por %p99, %p100
      %s102 = ssub.s32 %s19, %s31
      %s103 = ssub.s32 %s20, %s27
      %s104 = sor.u32 %s102, %s103
      %p105 = scmp.eq.s32.totalorder %s104, 0
      %s107 = sadd.s32 %s106, 1
      %s108 = scalar_select %p105, %s106, %s107
      %p111 = pneg %p105
      %p112 = scmp.eq.s32.totalorder %s12, 1
      %p113 = por %p111, %p112
      %p114 = scmp.ne.s32.totalorder %s106, %s109
      %p115 = scmp.eq.s32.totalorder %s12, 0
      %p116 = por %p114, %p115
      %p117 = scmp.ne.s32.totalorder %s106, %s109
      %p118 = scmp.eq.s32.totalorder %s17, 1
      %p119 = por %p117, %p118
      %p120 = scmp.ne.s32.totalorder %s109, %s110
      %p121 = scmp.eq.s32.totalorder %s17, 0
      %p122 = por %p120, %p121
      %p123 = scmp.ne.s32.totalorder %s109, %s110
      %p124 = scmp.eq.s32.totalorder %s18, 1
      %p125 = por %p123, %p124
      %p127 = scmp.ne.s32.totalorder %s110, %s126
      %p128 = scmp.eq.s32.totalorder %s18, 0
      %p129 = por %p127, %p128
      %p130 = scmp.le.s32.totalorder 1, %s12
      %p131 = scmp.lt.s32.totalorder %s12, 3
      %p132 = pnand %p130, %p131
      %p133 = pneg %p132
      // Predicated region
      $region9: #{tpu_custom_call.1} parent=5 // pred_check
        _
      $region10: #{tpu_custom_call.1} parent=5 // pred_check_branch
        %135 = sbr.rel (%p132) target = $region12
      $region11: #{tpu_custom_call.1} parent=5 // pred_region
        %s136 = ssub.s32 %s12, 1
        // Predicated region
        $region13: #{tpu_custom_call.1} parent=11 // pred_check
          %p137 = pneg %p73
        $region14: #{tpu_custom_call.1} parent=11 // pred_check_branch
          %139 = sbr.rel (%p137) target = $region16
        $region15: #{tpu_custom_call.1} parent=11 // pred_region
          _
        $region16: #{tpu_custom_call.1} parent=11 // pred_fallthru
          _
        // Predicated region
        $region17: #{tpu_custom_call.1} parent=11 // pred_check
          %p140 = pneg %p94
        $region18: #{tpu_custom_call.1} parent=11 // pred_check_branch
          %142 = sbr.rel (%p140) target = $region20
        $region19: #{tpu_custom_call.1} parent=11 // pred_region
          _
        $region20: #{tpu_custom_call.1} parent=11 // pred_fallthru
          _
      $region12: #{tpu_custom_call.1} parent=5 // pred_fallthru
        _
      %p143 = scmp.lt.s32.totalorder %s12, 2
      // Predicated region
      $region21: #{tpu_custom_call.1} parent=5 // pred_check
        %p144 = pneg %p143
      $region22: #{tpu_custom_call.1} parent=5 // pred_check_branch
        %146 = sbr.rel (%p144) target = $region24
      $region23: #{tpu_custom_call.1} parent=5 // pred_region
        // Predicated region
        $region25: #{tpu_custom_call.1} parent=23 // pred_check
          %p147 = pneg %p46
        $region26: #{tpu_custom_call.1} parent=23 // pred_check_branch
          %149 = sbr.rel (%p147) target = $region28
        $region27: #{tpu_custom_call.1} parent=23 // pred_region
          %p150 = scmp.lt.s32.totalorder %s19, 1
          %s151 = scalar_select %p150, %s19, 1
          %p152 = scmp.lt.s32.totalorder %s20, 0
          %s153 = scalar_select %p152, %s20, 0
          %s154 = sadd.s32 %s153, %s151
          %s155 = smul.addr %s154, 4
          %s156 = scalar_lea.vmem %s0, %s155
        $region28: #{tpu_custom_call.1} parent=23 // pred_fallthru
          _
      $region24: #{tpu_custom_call.1} parent=5 // pred_fallthru
        _
      %p157 = scmp.le.s32.totalorder 1, %s12
      %p158 = scmp.lt.s32.totalorder %s12, 3
      %p159 = pnand %p157, %p158
      %p160 = pneg %p159
      // Predicated region
      $region29: #{tpu_custom_call.1} parent=5 // pred_check
        _
      $region30: #{tpu_custom_call.1} parent=5 // pred_check_branch
        %162 = sbr.rel (%p159) target = $region32
      $region31: #{tpu_custom_call.1} parent=5 // pred_region
        %s163 = ssub.s32 %s12, 1
        %p164 = scmp.lt.s32.totalorder %s21, 1
        %s165 = scalar_select %p164, %s21, 1
        %p166 = scmp.lt.s32.totalorder %s22, 0
        %s167 = scalar_select %p166, %s22, 0
        %s168 = sadd.s32 %s167, %s165
        %s169 = smul.addr %s168, 4
        %s170 = scalar_lea.vmem %s0, %s169
        %p171 = pneg %p52
        %p172 = pneg %p49
        %p173 = pneg %p73
        %p174 = pneg %p70
        %p175 = pneg %p94
        %p176 = pneg %p91
        %p177 = pneg %p122
        %p178 = pneg %p119
        %s179 = sand.u32 %s109, 1
        %s180 = scalar_lea.sflag [#allocation3], %s179
        %s181 = sand.u32 %s109, 1
        %s182 = smul.addr %s181, 8
        %s183 = scalar_lea.vmem [#allocation2], %s182
        %p184 = scmp.lt.s32.totalorder %s21, 1
        %s185 = scalar_select %p184, %s21, 1
        %p186 = scmp.lt.s32.totalorder %s22, 0
        %s187 = scalar_select %p186, %s22, 0
        %s188 = sadd.s32 %s187, %s185
        %s189 = smul.addr %s188, 4
        %s190 = scalar_lea.vmem %s0, %s189
        %v191 = vlaneseq
        %v192 = vand.u32 %v191, 127
        %v193 = vld [vmem:[%s190] sm:$0xf]
        %s194 = smul.u32 %s22, 128
        %v195 = vstv %s194
        %v196 = vadd.s32 %v195, %v192
        %vm197 = vcmp.lt.s32.totalorder %v196, 16
        %v198 = vsel %vm197, %v193, 0.0
        %v199 = vld [vmem:[%s2] sm:$0xff]
        %201 = vset.pattern.permute.xlu0 0
        %202 = vperm.xlu0 %201, %v199
        %v203 = vpop.permute.xlu0 %202
        %205 = vrot.lane.b32.xlu0 %v198, 1
        %v206 = vpop.permute.xlu0 %205
        %vm207 = vcmp.eq.s32.totalorder %v192, 0
        %v208 = vsel %vm207, 0.0, %v206
        %v209 = vld [vmem:[%s1] sm:$0xff]
        %211 = vset.pattern.permute.xlu0 0
        %212 = vperm.xlu0 %211, %v209
        %v213 = vpop.permute.xlu0 %212
        %v215 = vlaneseq
        %v216 = vshrl.u32 %v215, 7
        %v217 = vsub.s32 0, %v216
        %v218 = vrot.slane %v208, %v217
        %v219 = vmul.f32 %v213, %v218
        %v220 = vadd.f32 %v203, %v219
        %s221 = scalar_lea.vmem %s1, 8
        %v222 = vld [vmem:[%s221] sm:$0xff]
        %224 = vset.pattern.permute.xlu0 0
        %225 = vperm.xlu0 %224, %v222
        %v226 = vpop.permute.xlu0 %225
        %v228 = vlaneseq
        %v229 = vshrl.u32 %v228, 7
        %v230 = vsub.s32 1, %v229
        %v231 = vrot.slane %v208, %v230
        %v232 = vmul.f32 %v226, %v231
        %v233 = vadd.f32 %v220, %v232
        %s234 = scalar_lea.vmem %s1, 16
        %v235 = vld [vmem:[%s234] sm:$0xff]
        %237 = vset.pattern.permute.xlu0 0
        %238 = vperm.xlu0 %237, %v235
        %v239 = vpop.permute.xlu0 %238
        %v241 = vlaneseq
        %v242 = vshrl.u32 %v241, 7
        %v243 = vsub.s32 2, %v242
        %v244 = vrot.slane %v208, %v243
        %v245 = vmul.f32 %v239, %v244
        %v246 = vadd.f32 %v233, %v245
        %s247 = scalar_lea.vmem %s1, 24
        %v248 = vld [vmem:[%s247] sm:$0xff]
        %250 = vset.pattern.permute.xlu0 0
        %251 = vperm.xlu0 %250, %v248
        %v252 = vpop.permute.xlu0 %251
        %v254 = vlaneseq
        %v255 = vshrl.u32 %v254, 7
        %v256 = vsub.s32 3, %v255
        %v257 = vrot.slane %v208, %v256
        %v258 = vmul.f32 %v252, %v257
        %v259 = vadd.f32 %v246, %v258
        %s260 = scalar_lea.vmem %s1, 32
        %v261 = vld [vmem:[%s260] sm:$0xff]
        %263 = vset.pattern.permute.xlu0 0
        %264 = vperm.xlu0 %263, %v261
        %v265 = vpop.permute.xlu0 %264
        %v267 = vlaneseq
        %v268 = vshrl.u32 %v267, 7
        %v269 = vsub.s32 0, %v268
        %v270 = vrot.slane %v198, %v269
        %v271 = vmul.f32 %v265, %v270
        %v272 = vadd.f32 %v259, %v271
        %s273 = scalar_lea.vmem %s1, 40
        %v274 = vld [vmem:[%s273] sm:$0xff]
        %276 = vset.pattern.permute.xlu0 0
        %277 = vperm.xlu0 %276, %v274
        %v278 = vpop.permute.xlu0 %277
        %v280 = vlaneseq
        %v281 = vshrl.u32 %v280, 7
        %v282 = vsub.s32 1, %v281
        %v283 = vrot.slane %v198, %v282
        %v284 = vmul.f32 %v278, %v283
        %v285 = vadd.f32 %v272, %v284
        %s286 = scalar_lea.vmem %s1, 48
        %v287 = vld [vmem:[%s286] sm:$0xff]
        %289 = vset.pattern.permute.xlu0 0
        %290 = vperm.xlu0 %289, %v287
        %v291 = vpop.permute.xlu0 %290
        %v293 = vlaneseq
        %v294 = vshrl.u32 %v293, 7
        %v295 = vsub.s32 2, %v294
        %v296 = vrot.slane %v198, %v295
        %v297 = vmul.f32 %v291, %v296
        %v298 = vadd.f32 %v285, %v297
        %s299 = scalar_lea.vmem %s1, 56
        %v300 = vld [vmem:[%s299] sm:$0xff]
        %302 = vset.pattern.permute.xlu0 0
        %303 = vperm.xlu0 %302, %v300
        %v304 = vpop.permute.xlu0 %303
        %v306 = vlaneseq
        %v307 = vshrl.u32 %v306, 7
        %v308 = vsub.s32 3, %v307
        %v309 = vrot.slane %v198, %v308
        %v310 = vmul.f32 %v304, %v309
        %v311 = vadd.f32 %v298, %v310
        %312 = vrot.lane.b32.xlu0 %v198, 127
        %v313 = vpop.permute.xlu0 %312
        %vm314 = vcmp.eq.s32.totalorder %v192, 127
        %v315 = vsel %vm314, 0.0, %v313
        %s316 = scalar_lea.vmem %s1, 64
        %v317 = vld [vmem:[%s316] sm:$0xff]
        %319 = vset.pattern.permute.xlu0 0
        %320 = vperm.xlu0 %319, %v317
        %v321 = vpop.permute.xlu0 %320
        %v323 = vlaneseq
        %v324 = vshrl.u32 %v323, 7
        %v325 = vsub.s32 0, %v324
        %v326 = vrot.slane %v315, %v325
        %v327 = vmul.f32 %v321, %v326
        %v328 = vadd.f32 %v311, %v327
        %s329 = scalar_lea.vmem %s1, 72
        %v330 = vld [vmem:[%s329] sm:$0xff]
        %332 = vset.pattern.permute.xlu0 0
        %333 = vperm.xlu0 %332, %v330
        %v334 = vpop.permute.xlu0 %333
        %v336 = vlaneseq
        %v337 = vshrl.u32 %v336, 7
        %v338 = vsub.s32 1, %v337
        %v339 = vrot.slane %v315, %v338
        %v340 = vmul.f32 %v334, %v339
        %v341 = vadd.f32 %v328, %v340
        %s342 = scalar_lea.vmem %s1, 80
        %v343 = vld [vmem:[%s342] sm:$0xff]
        %345 = vset.pattern.permute.xlu0 0
        %346 = vperm.xlu0 %345, %v343
        %v347 = vpop.permute.xlu0 %346
        %v349 = vlaneseq
        %v350 = vshrl.u32 %v349, 7
        %v351 = vsub.s32 2, %v350
        %v352 = vrot.slane %v315, %v351
        %v353 = vmul.f32 %v347, %v352
        %v354 = vadd.f32 %v341, %v353
        %s355 = scalar_lea.vmem %s1, 88
        %v356 = vld [vmem:[%s355] sm:$0xff]
        %358 = vset.pattern.permute.xlu0 0
        %359 = vperm.xlu0 %358, %v356
        %v360 = vpop.permute.xlu0 %359
        %v362 = vlaneseq
        %v363 = vshrl.u32 %v362, 7
        %v364 = vsub.s32 3, %v363
        %v365 = vrot.slane %v315, %v364
        %v366 = vmul.f32 %v360, %v365
        %v367 = vadd.f32 %v354, %v366
        %v368 = vmax.f32 %v367, 0.0
        %369 = vst [vmem:[%s183] sm:$0xff] %v368
        %s370 = sand.u32 %s109, 1
        %s371 = scalar_lea.sflag [#allocation3], %s370
        %s372 = sand.u32 %s109, 1
        %s373 = smul.addr %s372, 8
        %s374 = scalar_lea.vmem [#allocation2], %s373
        // Predicated region
        $region33: #{tpu_custom_call.1} parent=31 // pred_check
          %p375 = pneg %p119
        $region34: #{tpu_custom_call.1} parent=31 // pred_check_branch
          %377 = sbr.rel (%p375) target = $region36
        $region35: #{tpu_custom_call.1} parent=31 // pred_region
          %s379 = ssub.s32 128, 128
          %380 = vsyncadd %s371, %s379
          %s381 = sadd.s32 %s22, %s21
          %s382 = smul.addr %s381, 128
          %s383 = scalar_lea.hbm %s3, %s382
          %s385 = sshll.u32 %s374, 4
          %s386 = int_to_ptr.vmem [resolvable:$true] %s385
          %388 = dma.vmem_to_hbm [thread:$0]  %s386, 128, %s383, %s371
        $region36: #{tpu_custom_call.1} parent=31 // pred_fallthru
          _
      $region32: #{tpu_custom_call.1} parent=5 // pred_fallthru
        _
      %p389 = scmp.le.s32.totalorder 2, %s12
      // Predicated region
      $region37: #{tpu_custom_call.1} parent=5 // pred_check
        %p390 = pneg %p389
      $region38: #{tpu_custom_call.1} parent=5 // pred_check_branch
        %392 = sbr.rel (%p390) target = $region40
      $region39: #{tpu_custom_call.1} parent=5 // pred_region
        %s393 = ssub.s32 %s12, 2
        // Predicated region
        $region41: #{tpu_custom_call.1} parent=39 // pred_check
          %p394 = pneg %p125
        $region42: #{tpu_custom_call.1} parent=39 // pred_check_branch
          %396 = sbr.rel (%p394) target = $region44
        $region43: #{tpu_custom_call.1} parent=39 // pred_region
          %s397 = sand.u32 %s110, 1
          %s398 = scalar_lea.sflag [#allocation3], %s397
          %s399 = sand.u32 %s110, 1
          %s400 = smul.addr %s399, 8
          %s401 = scalar_lea.vmem [#allocation2], %s400
          %402 = dma.done %s398, 128
        $region44: #{tpu_custom_call.1} parent=39 // pred_fallthru
          _
      $region40: #{tpu_custom_call.1} parent=5 // pred_fallthru
        _
    $region6: #{tpu_custom_call.1} parent=1 // loop_footer
      %s16 = sadd.s32 1, %s12
    $region7: #{tpu_custom_call.1} parent=1 // loop_footer_branch
      %11 = sbr.rel target = $region3
    $region8: #{tpu_custom_call.1} parent=1 // loop_exit
      _
    %403 = vsyncpa [#allocation3], 1
    %s404 = scalar_lea.sflag [#allocation3], 1
    %405 = vsyncpa %s404, 1

</llo_original>
